<compile_context>
chip_gen: v5e
topology: v5e:2x2
jax: 0.10.0
libtpu: 0.0.40
codegen_flags: <defaults>
</compile_context>

<pallas_src>
import functools

import numpy as np
import jax
import jax.numpy as jnp
from jax import lax
from jax.experimental import pallas as pl
from jax.experimental.pallas import tpu as pltpu

# MobileNetV2 inverted-residual config: (expand_ratio t, out_channels c, repeats n, stride s)
MBV2_CFG = [
    (1, 16, 1, 1),
    (6, 24, 2, 2),
    (6, 32, 3, 2),
    (6, 64, 4, 2),
    (6, 96, 3, 1),
    (6, 160, 3, 2),
    (6, 320, 1, 1),
]
LAST_CHANNEL = 1280
BN_EPS = 1e-5
VMEM_LIMIT = 48 * 1024 * 1024   # fits under v7x's 64 MiB physical VMEM with headroom


# ----------------------------- Pallas kernels -----------------------------

def _mm_bias_act_kernel(x_ref, w_ref, b_ref, o_ref, *, relu6):
    """out = act(x @ w + bias) ; BN scale already folded into w."""
    y = jnp.dot(x_ref[...], w_ref[...], preferred_element_type=jnp.float32)
    y = y + b_ref[...]
    if relu6:
        y = jnp.clip(y, 0.0, 6.0)
    o_ref[...] = y.astype(o_ref.dtype)


def _dw_proj_store(e2d, x2d, dw_ref, db_ref, pw_ref, pb_ref, o_ref, exp_ref,
                   *, stride, use_res, H, W, Ho, Wo):
    """Shared tail of the fused block: depthwise 3x3 (+bias+ReLU6) from the
    zero-padded VMEM scratch, 1x1 projection (+bias), optional residual."""
    hidden = dw_ref.shape[-1]
    Cout = o_ref.shape[-1]

    # Write the expanded activation into the padded VMEM scratch (zero border).
    exp_ref[...] = jnp.zeros(exp_ref.shape, jnp.float32)
    exp_ref[1:H + 1, 1:W + 1, :] = e2d.reshape(H, W, hidden)

    # Depthwise 3x3: per-tap slices are read directly from the scratch ref
    # (no 9 materialized copies); stride-2 uses strided ref loads.
    acc = jnp.zeros((Ho, Wo, hidden), jnp.float32)
    for dy in range(3):
        for dx in range(3):
            if stride == 1:
                tap = exp_ref[dy:dy + Ho, dx:dx + Wo, :]
            else:
                tap = exp_ref[pl.ds(dy, Ho, stride=stride),
                              pl.ds(dx, Wo, stride=stride), :]
            acc = acc + tap * dw_ref[dy * 3 + dx, :]
    d = jnp.clip(acc + db_ref[0, :], 0.0, 6.0)

    # 1x1 projection (linear bottleneck, no activation).
    p = jnp.dot(d.reshape(Ho * Wo, hidden).astype(jnp.bfloat16), pw_ref[...],
                preferred_element_type=jnp.float32)
    p = p + pb_ref[...]
    if use_res:
        p = p + x2d.astype(jnp.float32)
    o_ref[...] = p.reshape(1, Ho, Wo, Cout).astype(o_ref.dtype)


def _block_kernel_expand(x_ref, ew_ref, eb_ref, dw_ref, db_ref, pw_ref, pb_ref,
                         o_ref, exp_ref, *, stride, use_res, H, W, Ho, Wo):
    Cin = x_ref.shape[-1]
    x2d = x_ref[...].reshape(H * W, Cin)                       # bf16
    e = jnp.dot(x2d, ew_ref[...], preferred_element_type=jnp.float32)
    e = jnp.clip(e + eb_ref[...], 0.0, 6.0)                    # expand + ReLU6
    _dw_proj_store(e, x2d, dw_ref, db_ref, pw_ref, pb_ref, o_ref, exp_ref,
                   stride=stride, use_res=use_res, H=H, W=W, Ho=Ho, Wo=Wo)


def _block_kernel_noexpand(x_ref, dw_ref, db_ref, pw_ref, pb_ref,
                           o_ref, exp_ref, *, stride, use_res, H, W, Ho, Wo):
    Cin = x_ref.shape[-1]
    x2d = x_ref[...].reshape(H * W, Cin)
    e = x2d.astype(jnp.float32)                                # t == 1: identity
    _dw_proj_store(e, x2d, dw_ref, db_ref, pw_ref, pb_ref, o_ref, exp_ref,
                   stride=stride, use_res=use_res, H=H, W=W, Ho=Ho, Wo=Wo)


def _pool_fc_kernel(x_ref, w_ref, b_ref, o_ref):
    """Global average pool over H,W + Linear classifier (lane-padded output)."""
    pooled = jnp.mean(x_ref[...].astype(jnp.float32), axis=(1, 2))   # (N, C)
    o_ref[...] = jnp.dot(pooled.astype(jnp.bfloat16), w_ref[...],
                         preferred_element_type=jnp.float32) + b_ref[...]


# ------------------------------ wrappers -----------------------------------

def matmul_bias_act(x2d, w, b, relu6, out_dtype=jnp.bfloat16):
    """Row-tiled matmul with folded-BN bias + optional ReLU6 epilogue."""
    M, K = x2d.shape
    N = w.shape[1]
    tm = 256 if M % 256 == 0 else (128 if M % 128 == 0 else M)
    return pl.pallas_call(
        functools.partial(_mm_bias_act_kernel, relu6=relu6),
        out_shape=jax.ShapeDtypeStruct((M, N), out_dtype),
        grid=(M // tm,),
        in_specs=[pl.BlockSpec((tm, K), lambda i: (i, 0)),
                  pl.BlockSpec((K, N), lambda i: (0, 0)),
                  pl.BlockSpec((1, N), lambda i: (0, 0))],
        out_specs=pl.BlockSpec((tm, N), lambda i: (i, 0)),
        compiler_params=pltpu.CompilerParams(
            dimension_semantics=("parallel",),
            vmem_limit_bytes=VMEM_LIMIT),
    )(x2d, w, b)


def pointwise_conv(x, w, b, relu6):
    """1x1 conv on NHWC via the tiled matmul kernel."""
    N, H, W, Cin = x.shape
    Cout = w.shape[1]
    y = matmul_bias_act(x.reshape(N * H * W, Cin), w, b, relu6)
    return y.reshape(N, H, W, Cout)


def conv3x3_stem(x, w, b, stride=2):
    """Stem 3x3 conv (pad=1, stride=2) via im2col glue + matmul kernel.
    K is padded from 27 to w.shape[0] (=32) for sublane alignment."""
    N, H, W, Cin = x.shape
    Cout = w.shape[1]
    Ho = (H - 1) // stride + 1
    Wo = (W - 1) // stride + 1
    xp = jnp.pad(x, ((0, 0), (1, 1), (1, 1), (0, 0)))
    cols = []
    for dy in range(3):
        for dx in range(3):
            cols.append(lax.slice(
                xp,
                (0, dy, dx, 0),
                (N, dy + (Ho - 1) * stride + 1, dx + (Wo - 1) * stride + 1, Cin),
                (1, stride, stride, 1)))
    patches = jnp.concatenate(cols, axis=-1)                     # (N,Ho,Wo,27)
    kpad = w.shape[0] - patches.shape[-1]
    if kpad > 0:
        patches = jnp.pad(patches, ((0, 0), (0, 0), (0, 0), (0, kpad)))
    y = matmul_bias_act(patches.reshape(N * Ho * Wo, w.shape[0]), w, b, relu6=True)
    return y.reshape(N, Ho, Wo, Cout)


def fused_inverted_residual(x, blk):
    """One MobileNetV2 inverted-residual block as a single fused pallas_call,
    gridded over the batch (parallel axis -> megacore on v7x)."""
    N, H, W, Cin = x.shape
    stride = blk["stride"]
    hidden = blk["dw_w"].shape[1]
    Cout = blk["proj_w"].shape[1]
    Ho = (H - 1) // stride + 1
    Wo = (W - 1) // stride + 1

    in_specs = [pl.BlockSpec((1, H, W, Cin), lambda n: (n, 0, 0, 0))]
    args = [x]
    if blk["has_expand"]:
        kernel_fn = _block_kernel_expand
        in_specs += [pl.BlockSpec(blk["expand_w"].shape, lambda n: (0, 0)),
                     pl.BlockSpec(blk["expand_b"].shape, lambda n: (0, 0))]
        args += [blk["expand_w"], blk["expand_b"]]
    else:
        kernel_fn = _block_kernel_noexpand
    in_specs += [pl.BlockSpec(blk["dw_w"].shape, lambda n: (0, 0)),
                 pl.BlockSpec(blk["dw_b"].shape, lambda n: (0, 0)),
                 pl.BlockSpec(blk["proj_w"].shape, lambda n: (0, 0)),
                 pl.BlockSpec(blk["proj_b"].shape, lambda n: (0, 0))]
    args += [blk["dw_w"], blk["dw_b"], blk["proj_w"], blk["proj_b"]]

    kernel = functools.partial(kernel_fn, stride=stride, use_res=blk["use_res"],
                               H=H, W=W, Ho=Ho, Wo=Wo)
    return pl.pallas_call(
        kernel,
        out_shape=jax.ShapeDtypeStruct((N, Ho, Wo, Cout), jnp.bfloat16),
        grid=(N,),
        in_specs=in_specs,
        out_specs=pl.BlockSpec((1, Ho, Wo, Cout), lambda n: (n, 0, 0, 0)),
        scratch_shapes=[pltpu.VMEM((H + 2, W + 2, hidden), jnp.float32)],
        compiler_params=pltpu.CompilerParams(
            dimension_semantics=("parallel",),
            vmem_limit_bytes=VMEM_LIMIT),
    )(*args)


def pool_fc(x, w, b):
    """Global-average-pool + Linear.  Output is lane-padded to a multiple of 128."""
    N, H, W, C = x.shape
    ncp = w.shape[1]
    return pl.pallas_call(
        _pool_fc_kernel,
        out_shape=jax.ShapeDtypeStruct((N, ncp), jnp.float32),
        grid=(1,),
        in_specs=[pl.BlockSpec((N, H, W, C), lambda i: (0, 0, 0, 0)),
                  pl.BlockSpec((C, ncp), lambda i: (0, 0)),
                  pl.BlockSpec((1, ncp), lambda i: (0, 0))],
        out_specs=pl.BlockSpec((N, ncp), lambda i: (0, 0)),
        compiler_params=pltpu.CompilerParams(
            dimension_semantics=("arbitrary",),
            vmem_limit_bytes=VMEM_LIMIT),
    )(x, w, b)


# --------------------------- parameter init --------------------------------

def _conv_bn_params(key, w_shape, cout, fan_in, w_dtype=jnp.bfloat16):
    """Random conv weight + folded eval-mode BatchNorm (scale folded into w)."""
    kw, kg, kb = jax.random.split(key, 3)
    w = jax.random.normal(kw, w_shape, jnp.float32) / np.sqrt(fan_in)
    gamma = 1.0 + 0.1 * jax.random.normal(kg, (cout,), jnp.float32)
    beta = 0.1 * jax.random.normal(kb, (cout,), jnp.float32)
    scale = gamma / np.sqrt(1.0 + BN_EPS)      # running_mean=0, running_var=1
    bias = beta
    return (w * scale).astype(w_dtype), bias.reshape(1, cout).astype(jnp.float32)


def init_params(key, num_classes):
    keys = iter(jax.random.split(key, 256))
    nk = lambda: next(keys)
    params = {"num_classes": num_classes}

    # Stem 3x3 (3->32), im2col K = 27 padded to 32.
    stem_w, stem_b = _conv_bn_params(nk(), (27, 32), 32, 27)
    params["stem_w"] = jnp.pad(stem_w, ((0, 5), (0, 0)))
    params["stem_b"] = stem_b

    blocks = []
    c_in = 32
    for t, c, n, s in MBV2_CFG:
        for i in range(n):
            stride = s if i == 0 else 1
            hidden = c_in * t
            blk = {
                "stride": stride,
                "use_res": (stride == 1 and c_in == c),
                "has_expand": (t != 1),
            }
            if t != 1:
                blk["expand_w"], blk["expand_b"] = _conv_bn_params(
                    nk(), (c_in, hidden), hidden, c_in)
            blk["dw_w"], blk["dw_b"] = _conv_bn_params(
                nk(), (9, hidden), hidden, 9, w_dtype=jnp.float32)
            blk["proj_w"], blk["proj_b"] = _conv_bn_params(
                nk(), (hidden, c), c, hidden)
            blocks.append(blk)
            c_in = c
    params["blocks"] = blocks

    params["head_w"], params["head_b"] = _conv_bn_params(
        nk(), (c_in, LAST_CHANNEL), LAST_CHANNEL, c_in)

    # Classifier Linear, padded to 128 output lanes.
    ncp = ((num_classes + 127) // 128) * 128
    kfw, kfb = jax.random.split(nk())
    fc_w = jax.random.normal(kfw, (LAST_CHANNEL, num_classes), jnp.float32) / np.sqrt(LAST_CHANNEL)
    fc_b = 0.01 * jax.random.normal(kfb, (num_classes,), jnp.float32)
    params["fc_w"] = jnp.pad(fc_w, ((0, 0), (0, ncp - num_classes))).astype(jnp.bfloat16)
    params["fc_b"] = jnp.pad(fc_b, (0, ncp - num_classes)).reshape(1, ncp)
    return params


# ------------------------------ forward ------------------------------------

def network_pretrained_forward(params, x_nchw):
    """Equivalent of NetworkPretrained.forward(x), x in NCHW float32."""
    x = jnp.transpose(x_nchw, (0, 2, 3, 1)).astype(jnp.bfloat16)   # NCHW -> NHWC

    # Stem: Conv 3x3 stride 2 (3->32) + folded BN + ReLU6
    x = conv3x3_stem(x, params["stem_w"], params["stem_b"], stride=2)

    # 17 fused inverted-residual blocks
    for blk in params["blocks"]:
        x = fused_inverted_residual(x, blk)

    # Head: Conv 1x1 (320->1280) + folded BN + ReLU6
    x = pointwise_conv(x, params["head_w"], params["head_b"], relu6=True)

    # Classifier: global average pool + (Dropout eval = identity) + Linear
    logits = pool_fc(x, params["fc_w"], params["fc_b"])
    return logits[:, :params["num_classes"]]


if __name__ == "__main__":
    num_classes = 5  # diabetic-retinopathy severity classes
    key = jax.random.PRNGKey(0)
    pkey, xkey = jax.random.split(key)

    params = init_params(pkey, num_classes)
    # Small input consistent with the module (NCHW, 3 channels, spatial 32)
    x = jax.random.normal(xkey, (2, 3, 32, 32), jnp.float32)

    logits = network_pretrained_forward(params, x)
    logits = jax.block_until_ready(logits)

    assert logits.shape == (2, num_classes), logits.shape
    assert bool(jnp.all(jnp.isfinite(logits)))
    print("KERNEL_OK")
</pallas_src>

<mosaic_0001>
module attributes {stable_mosaic.version = 11 : i64} {
  func.func @_mm_bias_act_kernel(%arg0: i32, %arg1: memref<256x32xbf16, #tpu.memory_space<vmem>>, %arg2: memref<32x32xbf16, #tpu.memory_space<vmem>>, %arg3: memref<1x32xf32, #tpu.memory_space<vmem>>, %arg4: memref<256x32xbf16, #tpu.memory_space<vmem>>) attributes {dimension_semantics = [#tpu.dimension_semantics<parallel>], iteration_bounds = array<i64: 2>, scalar_prefetch = 0 : i64, scratch_operands = 0 : i64, tpu.core_type = #tpu.core_type<tc>, window_params = [{transform_indices = @transform_0, window_bounds = array<i64: 256, 32>}, {pipeline_mode = #tpu.pipeline_mode<synchronous>, transform_indices = @transform_1, window_bounds = array<i64: 32, 32>}, {pipeline_mode = #tpu.pipeline_mode<synchronous>, transform_indices = @transform_2, window_bounds = array<i64: 1, 32>}, {transform_indices = @transform_3, window_bounds = array<i64: 256, 32>}]} {
    %c0 = arith.constant 0 : index
    %c0_0 = arith.constant 0 : index
    %0 = vector.load %arg1[%c0, %c0_0] : memref<256x32xbf16, #tpu.memory_space<vmem>>, vector<256x32xbf16>
    %c0_1 = arith.constant 0 : index
    %c0_2 = arith.constant 0 : index
    %1 = vector.load %arg2[%c0_1, %c0_2] : memref<32x32xbf16, #tpu.memory_space<vmem>>, vector<32x32xbf16>
    %cst = arith.constant dense<0.000000e+00> : vector<256x32xf32>
    %2 = tpu.matmul %0, %1, %cst {dimension_numbers = #tpu.dot_dimension_numbers<[1], [0], [0], [1], [0, 0, 1, 1], [], []>} : vector<256x32xbf16>, vector<32x32xbf16>, vector<256x32xf32> -> vector<256x32xf32>
    %c0_3 = arith.constant 0 : index
    %c0_4 = arith.constant 0 : index
    %3 = vector.load %arg3[%c0_3, %c0_4] : memref<1x32xf32, #tpu.memory_space<vmem>>, vector<1x32xf32>
    %4 = vector.broadcast %3 : vector<1x32xf32> to vector<256x32xf32>
    %5 = arith.addf %2, %4 : vector<256x32xf32>
    %cst_5 = arith.constant 0.000000e+00 : f32
    %cst_6 = arith.constant 6.000000e+00 : f32
    %6 = vector.broadcast %cst_5 : f32 to vector<256x32xf32>
    %7 = arith.maximumf %6, %5 : vector<256x32xf32>
    %8 = vector.broadcast %cst_6 : f32 to vector<256x32xf32>
    %9 = arith.minimumf %8, %7 : vector<256x32xf32>
    %10 = arith.truncf %9 : vector<256x32xf32> to vector<256x32xbf16>
    %c0_7 = arith.constant 0 : index
    %c0_8 = arith.constant 0 : index
    %11 = vector.load %arg4[%c0_7, %c0_8] : memref<256x32xbf16, #tpu.memory_space<vmem>>, vector<256x32xbf16>
    tpu.vector_store %arg4[%c0_7, %c0_8], %10 {strides = array<i32>} : memref<256x32xbf16, #tpu.memory_space<vmem>>, vector<256x32xbf16>,
    return
  }
  func.func @transform_0(%arg0: i32) -> (i32, i32) {
    %c0_i32 = arith.constant 0 : i32
    %c0_i32_0 = arith.constant 0 : i32
    return %arg0, %c0_i32 : i32, i32
  }
  func.func @transform_1(%arg0: i32) -> (i32, i32) {
    %c0_i32 = arith.constant 0 : i32
    %c0_i32_0 = arith.constant 0 : i32
    %c0_i32_1 = arith.constant 0 : i32
    return %c0_i32, %c0_i32_0 : i32, i32
  }
  func.func @transform_2(%arg0: i32) -> (i32, i32) {
    %c0_i32 = arith.constant 0 : i32
    %c0_i32_0 = arith.constant 0 : i32
    %c0_i32_1 = arith.constant 0 : i32
    return %c0_i32, %c0_i32_0 : i32, i32
  }
  func.func @transform_3(%arg0: i32) -> (i32, i32) {
    %c0_i32 = arith.constant 0 : i32
    %c0_i32_0 = arith.constant 0 : i32
    return %arg0, %c0_i32 : i32, i32
  }
}

</mosaic_0001>

<llo_original>
// kernel: tpu_custom_call.1
$region0: #{tpu_custom_call.1}
  #allocation0 [shape = 'u32[]', space=smem, size = 0x4, offset = 0x4, fixed_abs, tag = 'smem constant byte address 0x4 - core index']
  #allocation1 [shape = 'u32[72,128]{1,0:T(1,128)}', space=vmem, size = 0x9000, scoped, tag = 'internal scratch']
  %s0 = inlined_call_operand.vmem [shape: bf16[512,32], index: 0, kind: input, shape index: {}]
  %s1 = inlined_call_operand.vmem [shape: bf16[32,32], index: 1, kind: input, shape index: {}]
  %s2 = inlined_call_operand.vmem [shape: f32[1,32], index: 2, kind: input, shape index: {}]
  %s3 = inlined_call_operand.vmem [shape: bf16[512,32], index: 3, kind: output, shape index: {}]
  %s4 = sld [smem:[#allocation0]]
  $region45: #{tpu_custom_call.1} parent=0
    _
  %s6 = ssub.s32 1, %s4
  %s7 = scalar_select 0, %s6, %s4
  loop: start=0, step=1, limit=4
  $region2: #{tpu_custom_call.1} parent=0 // loop_pre_header
    _
  $region3: #{tpu_custom_call.1} parent=0 // loop_header
    %s9 = sphi 0, %s13
    %p10 = scmp.ge.s32.totalorder %s9, 4
    %s19 = sphi 0, %s21
    %s22 = sphi 0, %s19
    %s23 = sphi 0, %s22
    %s39 = sphi 0, %s23
    %s43 = sphi 0, %s43
    %s45 = sphi 0, %s43
    %s46 = sphi 0, %s45
    %s60 = sphi 0, %s46
    %s64 = sphi 0, %s64
    %s66 = sphi 0, %s64
    %s67 = sphi 0, %s66
    %s81 = sphi 0, %s67
    %s87 = sphi 0, %s89
    %s90 = sphi 0, %s87
    %s91 = sphi 0, %s90
    %s107 = sphi 0, %s91
  $region4: #{tpu_custom_call.1} parent=0 // loop_header_branch
    %12 = sbr.rel (%p10) target = $region8
  $region5: #{tpu_custom_call.1} parent=0 // loop_body
    %s14 = ssub.s32 %s9, 1
    %s15 = ssub.s32 %s9, 2
    %s16 = sadd.s32 %s9, 1
    %s17 = ssub.s32 %s9, %s16
    %p18 = scmp.eq.s32.totalorder %s17, 0
    %s20 = sadd.s32 %s19, 1
    %s21 = scalar_select %p18, %s19, %s20
    %p24 = pneg %p18
    %p25 = scmp.eq.s32.totalorder %s9, 1
    %p26 = por %p24, %p25
    %p27 = scmp.ne.s32.totalorder %s19, %s22
    %p28 = scmp.eq.s32.totalorder %s9, 0
    %p29 = por %p27, %p28
    %p30 = scmp.ne.s32.totalorder %s19, %s22
    %p31 = scmp.eq.s32.totalorder %s14, 1
    %p32 = por %p30, %p31
    %p33 = scmp.ne.s32.totalorder %s22, %s23
    %p34 = scmp.eq.s32.totalorder %s14, 0
    %p35 = por %p33, %p34
    %p36 = scmp.ne.s32.totalorder %s22, %s23
    %p37 = scmp.eq.s32.totalorder %s15, 1
    %p38 = por %p36, %p37
    %p40 = scmp.ne.s32.totalorder %s23, %s39
    %p41 = scmp.eq.s32.totalorder %s15, 0
    %p42 = por %p40, %p41
    %s44 = sadd.s32 %s43, 1
    %p47 = scmp.eq.s32.totalorder %s9, 1
    %p48 = scmp.ne.s32.totalorder %s43, %s45
    %p49 = scmp.eq.s32.totalorder %s9, 0
    %p50 = por %p48, %p49
    %p51 = scmp.ne.s32.totalorder %s43, %s45
    %p52 = scmp.eq.s32.totalorder %s14, 1
    %p53 = por %p51, %p52
    %p54 = scmp.ne.s32.totalorder %s45, %s46
    %p55 = scmp.eq.s32.totalorder %s14, 0
    %p56 = por %p54, %p55
    %p57 = scmp.ne.s32.totalorder %s45, %s46
    %p58 = scmp.eq.s32.totalorder %s15, 1
    %p59 = por %p57, %p58
    %p61 = scmp.ne.s32.totalorder %s46, %s60
    %p62 = scmp.eq.s32.totalorder %s15, 0
    %p63 = por %p61, %p62
    %s65 = sadd.s32 %s64, 1
    %p68 = scmp.eq.s32.totalorder %s9, 1
    %p69 = scmp.ne.s32.totalorder %s64, %s66
    %p70 = scmp.eq.s32.totalorder %s9, 0
    %p71 = por %p69, %p70
    %p72 = scmp.ne.s32.totalorder %s64, %s66
    %p73 = scmp.eq.s32.totalorder %s14, 1
    %p74 = por %p72, %p73
    %p75 = scmp.ne.s32.totalorder %s66, %s67
    %p76 = scmp.eq.s32.totalorder %s14, 0
    %p77 = por %p75, %p76
    %p78 = scmp.ne.s32.totalorder %s66, %s67
    %p79 = scmp.eq.s32.totalorder %s15, 1
    %p80 = por %p78, %p79
    %p82 = scmp.ne.s32.totalorder %s67, %s81
    %p83 = scmp.eq.s32.totalorder %s15, 0
    %p84 = por %p82, %p83
    %s85 = ssub.s32 %s9, %s16
    %p86 = scmp.eq.s32.totalorder %s85, 0
    %s88 = sadd.s32 %s87, 1
    %s89 = scalar_select %p86, %s87, %s88
    %p92 = pneg %p86
    %p93 = scmp.eq.s32.totalorder %s9, 1
    %p94 = por %p92, %p93
    %p95 = scmp.ne.s32.totalorder %s87, %s90
    %p96 = scmp.eq.s32.totalorder %s9, 0
    %p97 = por %p95, %p96
    %p98 = scmp.ne.s32.totalorder %s87, %s90
    %p99 = scmp.eq.s32.totalorder %s14, 1
    %p100 = por %p98, %p99
    %p101 = scmp.ne.s32.totalorder %s90, %s91
    %p102 = scmp.eq.s32.totalorder %s14, 0
    %p103 = por %p101, %p102
    %p104 = scmp.ne.s32.totalorder %s90, %s91
    %p105 = scmp.eq.s32.totalorder %s15, 1
    %p106 = por %p104, %p105
    %p108 = scmp.ne.s32.totalorder %s91, %s107
    %p109 = scmp.eq.s32.totalorder %s15, 0
    %p110 = por %p108, %p109
    %p111 = scmp.le.s32.totalorder 1, %s9
    %p112 = scmp.lt.s32.totalorder %s9, 3
    %p113 = pnand %p111, %p112
    %p114 = pneg %p113
    // Predicated region
    $region9: #{tpu_custom_call.1} parent=5 // pred_check
      _
    $region10: #{tpu_custom_call.1} parent=5 // pred_check_branch
      %116 = sbr.rel (%p113) target = $region12
    $region11: #{tpu_custom_call.1} parent=5 // pred_region
      %s117 = ssub.s32 %s9, 1
      // Predicated region
      $region13: #{tpu_custom_call.1} parent=11 // pred_check
        %p118 = pneg %p56
      $region14: #{tpu_custom_call.1} parent=11 // pred_check_branch
        %120 = sbr.rel (%p118) target = $region16
      $region15: #{tpu_custom_call.1} parent=11 // pred_region
        _
      $region16: #{tpu_custom_call.1} parent=11 // pred_fallthru
        _
      // Predicated region
      $region17: #{tpu_custom_call.1} parent=11 // pred_check
        %p121 = pneg %p77
      $region18: #{tpu_custom_call.1} parent=11 // pred_check_branch
        %123 = sbr.rel (%p121) target = $region20
      $region19: #{tpu_custom_call.1} parent=11 // pred_region
        _
      $region20: #{tpu_custom_call.1} parent=11 // pred_fallthru
        _
    $region12: #{tpu_custom_call.1} parent=5 // pred_fallthru
      _
    %p124 = scmp.lt.s32.totalorder %s9, 2
    // Predicated region
    $region21: #{tpu_custom_call.1} parent=5 // pred_check
      %p125 = pneg %p124
    $region22: #{tpu_custom_call.1} parent=5 // pred_check_branch
      %127 = sbr.rel (%p125) target = $region24
    $region23: #{tpu_custom_call.1} parent=5 // pred_region
      // Predicated region
      $region25: #{tpu_custom_call.1} parent=23 // pred_check
        %p128 = pneg %p29
      $region26: #{tpu_custom_call.1} parent=23 // pred_check_branch
        %130 = sbr.rel (%p128) target = $region28
      $region27: #{tpu_custom_call.1} parent=23 // pred_region
        %s131 = smul.u32 32, %s9
        %p132 = scmp.lt.s32.totalorder %s131, 63
        %s133 = scalar_select %p132, %s131, 63
        %s134 = smul.addr %s133, 4
        %s135 = scalar_lea.vmem %s0, %s134
        %s136 = smul.u32 32, %s9
      $region28: #{tpu_custom_call.1} parent=23 // pred_fallthru
        _
    $region24: #{tpu_custom_call.1} parent=5 // pred_fallthru
      _
    %p137 = scmp.le.s32.totalorder 1, %s9
    %p138 = scmp.lt.s32.totalorder %s9, 3
    %p139 = pnand %p137, %p138
    %p140 = pneg %p139
    // Predicated region
    $region29: #{tpu_custom_call.1} parent=5 // pred_check
      _
    $region30: #{tpu_custom_call.1} parent=5 // pred_check_branch
      %142 = sbr.rel (%p139) target = $region32
    $region31: #{tpu_custom_call.1} parent=5 // pred_region
      %s143 = ssub.s32 %s9, 1
      %s144 = smul.u32 32, %s14
      %p145 = scmp.lt.s32.totalorder %s144, 63
      %s146 = scalar_select %p145, %s144, 63
      %s147 = smul.addr %s146, 4
      %s148 = scalar_lea.vmem %s0, %s147
      %p149 = pneg %p35
      %p150 = pneg %p32
      %p151 = pneg %p56
      %p152 = pneg %p53
      %p153 = pneg %p77
      %p154 = pneg %p74
      %p155 = pneg %p103
      %p156 = pneg %p100
      %s157 = smul.u32 32, %s14
      %p158 = scmp.lt.s32.totalorder %s157, 63
      %s159 = scalar_select %p158, %s157, 63
      %s160 = smul.addr %s159, 4
      %s161 = scalar_lea.vmem %s3, %s160
      %s162 = smul.u32 32, %s14
      %p163 = scmp.lt.s32.totalorder %s162, 63
      %s164 = scalar_select %p163, %s162, 63
      %s165 = smul.addr %s164, 4
      %s166 = scalar_lea.vmem %s0, %s165
      %s167 = smul.u32 32, %s14
      %s168 = smul.u32 32, %s14
      %p169 = scmp.lt.s32.totalorder %s168, 63
      %s170 = scalar_select %p169, %s168, 63
      %s171 = smul.addr %s170, 4
      %s172 = scalar_lea.vmem %s3, %s171
      %s173 = smul.u32 32, %s14
      %v175 = vld [vmem:[%s166] sm:$0xf]
      %v176 = vld [vmem:[%s166 + $0x4] sm:$0xf]
      %v177 = vld [vmem:[%s166 + $0x8] sm:$0xf]
      %v178 = vld [vmem:[%s166 + $0xc] sm:$0xf]
      %v179 = vld [vmem:[%s166 + $0x10] sm:$0xf]
      %v180 = vld [vmem:[%s166 + $0x14] sm:$0xf]
      %v181 = vld [vmem:[%s166 + $0x18] sm:$0xf]
      %v182 = vld [vmem:[%s166 + $0x1c] sm:$0xf]
      %v183 = vld [vmem:[%s166 + $0x20] sm:$0xf]
      %v184 = vld [vmem:[%s166 + $0x24] sm:$0xf]
      %v185 = vld [vmem:[%s166 + $0x28] sm:$0xf]
      %v186 = vld [vmem:[%s166 + $0x2c] sm:$0xf]
      %v187 = vld [vmem:[%s166 + $0x30] sm:$0xf]
      %v188 = vld [vmem:[%s166 + $0x34] sm:$0xf]
      %v189 = vld [vmem:[%s166 + $0x38] sm:$0xf]
      %v190 = vld [vmem:[%s166 + $0x3c] sm:$0xf]
      %v191 = vld [vmem:[%s166 + $0x40] sm:$0xf]
      %v192 = vld [vmem:[%s166 + $0x44] sm:$0xf]
      %v193 = vld [vmem:[%s166 + $0x48] sm:$0xf]
      %v194 = vld [vmem:[%s166 + $0x4c] sm:$0xf]
      %v195 = vld [vmem:[%s166 + $0x50] sm:$0xf]
      %v196 = vld [vmem:[%s166 + $0x54] sm:$0xf]
      %v197 = vld [vmem:[%s166 + $0x58] sm:$0xf]
      %v198 = vld [vmem:[%s166 + $0x5c] sm:$0xf]
      %v199 = vld [vmem:[%s166 + $0x60] sm:$0xf]
      %v200 = vld [vmem:[%s166 + $0x64] sm:$0xf]
      %v201 = vld [vmem:[%s166 + $0x68] sm:$0xf]
      %v202 = vld [vmem:[%s166 + $0x6c] sm:$0xf]
      %v203 = vld [vmem:[%s166 + $0x70] sm:$0xf]
      %v204 = vld [vmem:[%s166 + $0x74] sm:$0xf]
      %v205 = vld [vmem:[%s166 + $0x78] sm:$0xf]
      %v206 = vld [vmem:[%s166 + $0x7c] sm:$0xf]
      %v207 = vld [vmem:[%s1] sm:$0xf]
      %v208 = vld [vmem:[%s1 + $0x4] sm:$0xf]
      %v209 = vld [vmem:[%s1 + $0x8] sm:$0xf]
      %v210 = vld [vmem:[%s1 + $0xc] sm:$0xf]
      %v211 = vld [vmem:[%s2] sm:$0x1]
      %v213 = vperm.slane %v211, 0
      %v247 = vunpack.c.l.b16 %v175
      %v248 = vunpack.c.l.b16 %v176
      %v249 = vunpack.c.l.b16 %v177
      %v250 = vunpack.c.l.b16 %v178
      %v251 = vunpack.c.l.b16 %v179
      %v252 = vunpack.c.l.b16 %v180
      %v253 = vunpack.c.l.b16 %v181
      %v254 = vunpack.c.l.b16 %v182
      %v255 = vunpack.c.l.b16 %v183
      %v256 = vunpack.c.l.b16 %v184
      %v257 = vunpack.c.l.b16 %v185
      %v258 = vunpack.c.l.b16 %v186
      %v259 = vunpack.c.l.b16 %v187
      %v260 = vunpack.c.l.b16 %v188
      %v261 = vunpack.c.l.b16 %v189
      %v262 = vunpack.c.l.b16 %v190
      %v263 = vunpack.c.l.b16 %v191
      %v264 = vunpack.c.l.b16 %v192
      %v265 = vunpack.c.l.b16 %v193
      %v266 = vunpack.c.l.b16 %v194
      %v267 = vunpack.c.l.b16 %v195
      %v268 = vunpack.c.l.b16 %v196
      %v269 = vunpack.c.l.b16 %v197
      %v270 = vunpack.c.l.b16 %v198
      %v271 = vunpack.c.l.b16 %v199
      %v272 = vunpack.c.l.b16 %v200
      %v273 = vunpack.c.l.b16 %v201
      %v274 = vunpack.c.l.b16 %v202
      %v275 = vunpack.c.l.b16 %v203
      %v276 = vunpack.c.l.b16 %v204
      %v277 = vunpack.c.l.b16 %v205
      %v278 = vunpack.c.l.b16 %v206
      %v279 = vpack.c.b16 %v248, %v247
      %v280 = vpack.c.b16 %v250, %v249
      %v281 = vpack.c.b16 %v252, %v251
      %v282 = vpack.c.b16 %v254, %v253
      %v283 = vpack.c.b16 %v256, %v255
      %v284 = vpack.c.b16 %v258, %v257
      %v285 = vpack.c.b16 %v260, %v259
      %v286 = vpack.c.b16 %v262, %v261
      %v287 = vpack.c.b16 %v264, %v263
      %v288 = vpack.c.b16 %v266, %v265
      %v289 = vpack.c.b16 %v268, %v267
      %v290 = vpack.c.b16 %v270, %v269
      %v291 = vpack.c.b16 %v272, %v271
      %v292 = vpack.c.b16 %v274, %v273
      %v293 = vpack.c.b16 %v276, %v275
      %v294 = vpack.c.b16 %v278, %v277
      %v299 = vunpack.c.l.b16 %v207
      %v300 = vunpack.c.l.b16 %v208
      %v301 = vunpack.c.l.b16 %v209
      %v302 = vunpack.c.l.b16 %v210
      %v303 = vpack.c.b16 %v300, %v299
      %v304 = vpack.c.b16 %v302, %v301
      %vm307 = vcmask 261120
      %v309 = vsel %vm307, %v279, 0
      %v312 = vsel %vm307, %v280, 0
      %v315 = vsel %vm307, %v281, 0
      %v318 = vsel %vm307, %v282, 0
      %v321 = vsel %vm307, %v283, 0
      %v324 = vsel %vm307, %v284, 0
      %v327 = vsel %vm307, %v285, 0
      %v330 = vsel %vm307, %v286, 0
      %v333 = vsel %vm307, %v287, 0
      %v336 = vsel %vm307, %v288, 0
      %v339 = vsel %vm307, %v289, 0
      %v342 = vsel %vm307, %v290, 0
      %v345 = vsel %vm307, %v291, 0
      %v348 = vsel %vm307, %v292, 0
      %v351 = vsel %vm307, %v293, 0
      %v354 = vsel %vm307, %v294, 0
      %356 = vmatpush.bf16.msra.mxu0 0
      %357 = vmatpush.bf16.msra.mxu0 0
      %358 = vmatpush.bf16.msra.mxu0 0
      %359 = vmatpush.bf16.msra.mxu0 0
      %360 = vmatpush.bf16.msra.mxu0 0
      %361 = vmatpush.bf16.msra.mxu0 0
      %362 = vmatpush.bf16.msra.mxu0 %v304
      %363 = vmatpush.bf16.msra.mxu0 %v303
      %364 = vmatmul.bf16.gmra.mxu0 %v309
      %v365 = vpop.f32.mrf.mxu0
      %v366 = vadd.f32 %v213, %v365
      %v367 = vpop.f32.mrf.mxu0
      %v368 = vadd.f32 %v213, %v367
      %369 = vmatmul.bf16.gmra.mxu0 %v312
      %v370 = vpop.f32.mrf.mxu0
      %v371 = vadd.f32 %v213, %v370
      %v372 = vpop.f32.mrf.mxu0
      %v373 = vadd.f32 %v213, %v372
      %374 = vmatmul.bf16.gmra.mxu0 %v315
      %v375 = vpop.f32.mrf.mxu0
      %v376 = vadd.f32 %v213, %v375
      %v377 = vpop.f32.mrf.mxu0
      %v378 = vadd.f32 %v213, %v377
      %379 = vmatmul.bf16.gmra.mxu0 %v318
      %v380 = vpop.f32.mrf.mxu0
      %v381 = vadd.f32 %v213, %v380
      %v382 = vpop.f32.mrf.mxu0
      %v383 = vadd.f32 %v213, %v382
      %384 = vmatmul.bf16.gmra.mxu0 %v321
      %v385 = vpop.f32.mrf.mxu0
      %v386 = vadd.f32 %v213, %v385
      %v387 = vpop.f32.mrf.mxu0
      %v388 = vadd.f32 %v213, %v387
      %389 = vmatmul.bf16.gmra.mxu0 %v324
      %v390 = vpop.f32.mrf.mxu0
      %v391 = vadd.f32 %v213, %v390
      %v392 = vpop.f32.mrf.mxu0
      %v393 = vadd.f32 %v213, %v392
      %394 = vmatmul.bf16.gmra.mxu0 %v327
      %v395 = vpop.f32.mrf.mxu0
      %v396 = vadd.f32 %v213, %v395
      %v397 = vpop.f32.mrf.mxu0
      %v398 = vadd.f32 %v213, %v397
      %399 = vmatmul.bf16.gmra.mxu0 %v330
      %v400 = vpop.f32.mrf.mxu0
      %v401 = vadd.f32 %v213, %v400
      %v402 = vpop.f32.mrf.mxu0
      %v403 = vadd.f32 %v213, %v402
      %404 = vmatmul.bf16.gmra.mxu0 %v333
      %v405 = vpop.f32.mrf.mxu0
      %v406 = vadd.f32 %v213, %v405
      %v407 = vpop.f32.mrf.mxu0
      %v408 = vadd.f32 %v213, %v407
      %409 = vmatmul.bf16.gmra.mxu0 %v336
      %v410 = vpop.f32.mrf.mxu0
      %v411 = vadd.f32 %v213, %v410
      %v412 = vpop.f32.mrf.mxu0
      %v413 = vadd.f32 %v213, %v412
      %414 = vmatmul.bf16.gmra.mxu0 %v339
      %v415 = vpop.f32.mrf.mxu0
      %v416 = vadd.f32 %v213, %v415
      %v417 = vpop.f32.mrf.mxu0
      %v418 = vadd.f32 %v213, %v417
      %419 = vmatmul.bf16.gmra.mxu0 %v342
      %v420 = vpop.f32.mrf.mxu0
      %v421 = vadd.f32 %v213, %v420
      %v422 = vpop.f32.mrf.mxu0
      %v423 = vadd.f32 %v213, %v422
      %424 = vmatmul.bf16.gmra.mxu0 %v345
      %v425 = vpop.f32.mrf.mxu0
      %v426 = vadd.f32 %v213, %v425
      %v427 = vpop.f32.mrf.mxu0
      %v428 = vadd.f32 %v213, %v427
      %429 = vmatmul.bf16.gmra.mxu0 %v348
      %v430 = vpop.f32.mrf.mxu0
      %v431 = vadd.f32 %v213, %v430
      %v432 = vpop.f32.mrf.mxu0
      %v433 = vadd.f32 %v213, %v432
      %434 = vmatmul.bf16.gmra.mxu0 %v351
      %v435 = vpop.f32.mrf.mxu0
      %v436 = vadd.f32 %v213, %v435
      %v437 = vpop.f32.mrf.mxu0
      %v438 = vadd.f32 %v213, %v437
      %439 = vmatmul.bf16.gmra.mxu0 %v354
      %v440 = vpop.f32.mrf.mxu0
      %v441 = vadd.f32 %v213, %v440
      %v442 = vpop.f32.mrf.mxu0
      %v443 = vadd.f32 %v213, %v442
      %444 = vdwg.mxu0
      %v445 = vmax.f32 %v366, 0.0
      %v446 = vmax.f32 %v368, 0.0
      %v447 = vmax.f32 %v371, 0.0
      %v448 = vmax.f32 %v373, 0.0
      %v449 = vmax.f32 %v376, 0.0
      %v450 = vmax.f32 %v378, 0.0
      %v451 = vmax.f32 %v381, 0.0
      %v452 = vmax.f32 %v383, 0.0
      %v453 = vmax.f32 %v386, 0.0
      %v454 = vmax.f32 %v388, 0.0
      %v455 = vmax.f32 %v391, 0.0
      %v456 = vmax.f32 %v393, 0.0
      %v457 = vmax.f32 %v396, 0.0
      %v458 = vmax.f32 %v398, 0.0
      %v459 = vmax.f32 %v401, 0.0
      %v460 = vmax.f32 %v403, 0.0
      %v461 = vmax.f32 %v406, 0.0
      %v462 = vmax.f32 %v408, 0.0
      %v463 = vmax.f32 %v411, 0.0
      %v464 = vmax.f32 %v413, 0.0
      %v465 = vmax.f32 %v416, 0.0
      %v466 = vmax.f32 %v418, 0.0
      %v467 = vmax.f32 %v421, 0.0
      %v468 = vmax.f32 %v423, 0.0
      %v469 = vmax.f32 %v426, 0.0
      %v470 = vmax.f32 %v428, 0.0
      %v471 = vmax.f32 %v431, 0.0
      %v472 = vmax.f32 %v433, 0.0
      %v473 = vmax.f32 %v436, 0.0
      %v474 = vmax.f32 %v438, 0.0
      %v475 = vmax.f32 %v441, 0.0
      %v476 = vmax.f32 %v443, 0.0
      %v477 = vmin.f32 %v445, 6.0
      %v478 = vmin.f32 %v446, 6.0
      %v479 = vmin.f32 %v447, 6.0
      %v480 = vmin.f32 %v448, 6.0
      %v481 = vmin.f32 %v449, 6.0
      %v482 = vmin.f32 %v450, 6.0
      %v483 = vmin.f32 %v451, 6.0
      %v484 = vmin.f32 %v452, 6.0
      %v485 = vmin.f32 %v453, 6.0
      %v486 = vmin.f32 %v454, 6.0
      %v487 = vmin.f32 %v455, 6.0
      %v488 = vmin.f32 %v456, 6.0
      %v489 = vmin.f32 %v457, 6.0
      %v490 = vmin.f32 %v458, 6.0
      %v491 = vmin.f32 %v459, 6.0
      %v492 = vmin.f32 %v460, 6.0
      %v493 = vmin.f32 %v461, 6.0
      %v494 = vmin.f32 %v462, 6.0
      %v495 = vmin.f32 %v463, 6.0
      %v496 = vmin.f32 %v464, 6.0
      %v497 = vmin.f32 %v465, 6.0
      %v498 = vmin.f32 %v466, 6.0
      %v499 = vmin.f32 %v467, 6.0
      %v500 = vmin.f32 %v468, 6.0
      %v501 = vmin.f32 %v469, 6.0
      %v502 = vmin.f32 %v470, 6.0
      %v503 = vmin.f32 %v471, 6.0
      %v504 = vmin.f32 %v472, 6.0
      %v505 = vmin.f32 %v473, 6.0
      %v506 = vmin.f32 %v474, 6.0
      %v507 = vmin.f32 %v475, 6.0
      %v508 = vmin.f32 %v476, 6.0
      %v509 = vpack.c.bf16 %v477, %v477
      %v510 = vpack.c.bf16 %v478, %v478
      %v511 = vpack.c.bf16 %v479, %v479
      %v512 = vpack.c.bf16 %v480, %v480
      %v513 = vpack.c.bf16 %v481, %v481
      %v514 = vpack.c.bf16 %v482, %v482
      %v515 = vpack.c.bf16 %v483, %v483
      %v516 = vpack.c.bf16 %v484, %v484
      %v517 = vpack.c.bf16 %v485, %v485
      %v518 = vpack.c.bf16 %v486, %v486
      %v519 = vpack.c.bf16 %v487, %v487
      %v520 = vpack.c.bf16 %v488, %v488
      %v521 = vpack.c.bf16 %v489, %v489
      %v522 = vpack.c.bf16 %v490, %v490
      %v523 = vpack.c.bf16 %v491, %v491
      %v524 = vpack.c.bf16 %v492, %v492
      %v525 = vpack.c.bf16 %v493, %v493
      %v526 = vpack.c.bf16 %v494, %v494
      %v527 = vpack.c.bf16 %v495, %v495
      %v528 = vpack.c.bf16 %v496, %v496
      %v529 = vpack.c.bf16 %v497, %v497
      %v530 = vpack.c.bf16 %v498, %v498
      %v531 = vpack.c.bf16 %v499, %v499
      %v532 = vpack.c.bf16 %v500, %v500
      %v533 = vpack.c.bf16 %v501, %v501
      %v534 = vpack.c.bf16 %v502, %v502
      %v535 = vpack.c.bf16 %v503, %v503
      %v536 = vpack.c.bf16 %v504, %v504
      %v537 = vpack.c.bf16 %v505, %v505
      %v538 = vpack.c.bf16 %v506, %v506
      %v539 = vpack.c.bf16 %v507, %v507
      %v540 = vpack.c.bf16 %v508, %v508
      %vm541 = vcmask 257024
      %542 = vst.msk [vmem:[%s172] sm:$0xf] %vm541, %v509
      %543 = vst.msk [vmem:[%s172 + $0x4] sm:$0xf] %vm541, %v510
      %544 = vst.msk [vmem:[%s172 + $0x8] sm:$0xf] %vm541, %v511
      %545 = vst.msk [vmem:[%s172 + $0xc] sm:$0xf] %vm541, %v512
      %546 = vst.msk [vmem:[%s172 + $0x10] sm:$0xf] %vm541, %v513
      %547 = vst.msk [vmem:[%s172 + $0x14] sm:$0xf] %vm541, %v514
      %548 = vst.msk [vmem:[%s172 + $0x18] sm:$0xf] %vm541, %v515
      %549 = vst.msk [vmem:[%s172 + $0x1c] sm:$0xf] %vm541, %v516
      %550 = vst.msk [vmem:[%s172 + $0x20] sm:$0xf] %vm541, %v517
      %551 = vst.msk [vmem:[%s172 + $0x24] sm:$0xf] %vm541, %v518
      %552 = vst.msk [vmem:[%s172 + $0x28] sm:$0xf] %vm541, %v519
      %553 = vst.msk [vmem:[%s172 + $0x2c] sm:$0xf] %vm541, %v520
      %554 = vst.msk [vmem:[%s172 + $0x30] sm:$0xf] %vm541, %v521
      %555 = vst.msk [vmem:[%s172 + $0x34] sm:$0xf] %vm541, %v522
      %556 = vst.msk [vmem:[%s172 + $0x38] sm:$0xf] %vm541, %v523
      %557 = vst.msk [vmem:[%s172 + $0x3c] sm:$0xf] %vm541, %v524
      %558 = vst.msk [vmem:[%s172 + $0x40] sm:$0xf] %vm541, %v525
      %559 = vst.msk [vmem:[%s172 + $0x44] sm:$0xf] %vm541, %v526
      %560 = vst.msk [vmem:[%s172 + $0x48] sm:$0xf] %vm541, %v527
      %561 = vst.msk [vmem:[%s172 + $0x4c] sm:$0xf] %vm541, %v528
      %562 = vst.msk [vmem:[%s172 + $0x50] sm:$0xf] %vm541, %v529
      %563 = vst.msk [vmem:[%s172 + $0x54] sm:$0xf] %vm541, %v530
      %564 = vst.msk [vmem:[%s172 + $0x58] sm:$0xf] %vm541, %v531
      %565 = vst.msk [vmem:[%s172 + $0x5c] sm:$0xf] %vm541, %v532
      %566 = vst.msk [vmem:[%s172 + $0x60] sm:$0xf] %vm541, %v533
      %567 = vst.msk [vmem:[%s172 + $0x64] sm:$0xf] %vm541, %v534
      %568 = vst.msk [vmem:[%s172 + $0x68] sm:$0xf] %vm541, %v535
      %569 = vst.msk [vmem:[%s172 + $0x6c] sm:$0xf] %vm541, %v536
      %570 = vst.msk [vmem:[%s172 + $0x70] sm:$0xf] %vm541, %v537
      %571 = vst.msk [vmem:[%s172 + $0x74] sm:$0xf] %vm541, %v538
      %572 = vst.msk [vmem:[%s172 + $0x78] sm:$0xf] %vm541, %v539
      %573 = vst.msk [vmem:[%s172 + $0x7c] sm:$0xf] %vm541, %v540
      %s574 = smul.u32 32, %s14
      %p575 = scmp.lt.s32.totalorder %s574, 63
      %s576 = scalar_select %p575, %s574, 63
      %s577 = smul.addr %s576, 4
      %s578 = scalar_lea.vmem %s3, %s577
      // Predicated region
      $region33: #{tpu_custom_call.1} parent=31 // pred_check
        %p579 = pneg %p100
      $region34: #{tpu_custom_call.1} parent=31 // pred_check_branch
        %581 = sbr.rel (%p579) target = $region36
      $region35: #{tpu_custom_call.1} parent=31 // pred_region
        %s582 = smul.u32 32, %s14
      $region36: #{tpu_custom_call.1} parent=31 // pred_fallthru
        _
    $region32: #{tpu_custom_call.1} parent=5 // pred_fallthru
      _
    %p583 = scmp.le.s32.totalorder 2, %s9
    // Predicated region
    $region37: #{tpu_custom_call.1} parent=5 // pred_check
      %p584 = pneg %p583
    $region38: #{tpu_custom_call.1} parent=5 // pred_check_branch
      %586 = sbr.rel (%p584) target = $region40
    $region39: #{tpu_custom_call.1} parent=5 // pred_region
      %s587 = ssub.s32 %s9, 2
      // Predicated region
      $region41: #{tpu_custom_call.1} parent=39 // pred_check
        %p588 = pneg %p106
      $region42: #{tpu_custom_call.1} parent=39 // pred_check_branch
        %590 = sbr.rel (%p588) target = $region44
      $region43: #{tpu_custom_call.1} parent=39 // pred_region
        %s591 = smul.u32 32, %s15
        %p592 = scmp.lt.s32.totalorder %s591, 63
        %s593 = scalar_select %p592, %s591, 63
        %s594 = smul.addr %s593, 4
        %s595 = scalar_lea.vmem %s3, %s594
      $region44: #{tpu_custom_call.1} parent=39 // pred_fallthru
        _
    $region40: #{tpu_custom_call.1} parent=5 // pred_fallthru
      _
  $region6: #{tpu_custom_call.1} parent=0 // loop_footer
    %s13 = sadd.s32 1, %s9
  $region7: #{tpu_custom_call.1} parent=0 // loop_footer_branch
    %8 = sbr.rel target = $region3
  $region8: #{tpu_custom_call.1} parent=0 // loop_exit
    _

</llo_original>
